<compile_context>
chip_gen: v7x
topology: tpu7x:2x2x1
jax: 0.10.0
libtpu: 0.0.40
codegen_flags: <defaults>
</compile_context>

<pallas_src>
import functools
import math

import jax
import jax.numpy as jnp
from jax import lax
from jax.experimental import pallas as pl
from jax.experimental.pallas import tpu as pltpu

# x[m, k] contracted with w[n, k]  ->  out[m, n]  (== x @ w.T).  The weight
# stays in native nn.Linear [O, F] layout; the MXU consumes the transposed
# operand directly (no XLU transpose, no wrapper-side weight.T HBM copy).
_CONTRACT_LAST = (((1,), (1,)), ((), ()))

_SMALL_PATH_BYTES = 12 * 1024 * 1024  # whole problem comfortably fits in VMEM


def _round_up(n: int, m: int) -> int:
    return ((n + m - 1) // m) * m


def _pick_tile(padded_dim: int, cap: int, align: int) -> int:
    """Largest tile <= cap that divides padded_dim (padded_dim % align == 0)."""
    if padded_dim <= cap:
        return padded_dim  # full-dim block: no grid along this axis
    t = cap
    while t > align and padded_dim % t:
        t //= 2
    return t


def _linear_whole_k_kernel(x_ref, w_ref, b_ref, o_ref):
    """y = x @ w.T + b with the whole K (feature) extent in one block.

    x_ref: [tm, K]   w_ref: [tn, K] (native [O, F] layout)   b_ref: [1, tn]
    """
    acc = lax.dot_general(x_ref[...], w_ref[...], _CONTRACT_LAST,
                          preferred_element_type=jnp.float32)
    o_ref[...] = (acc + b_ref[...]).astype(o_ref.dtype)


def _linear_acc_kernel(x_ref, w_ref, b_ref, o_ref, acc_ref):
    """K-tiled variant: f32 VMEM accumulator across the sequential K axis."""
    k = pl.program_id(2)
    prod = lax.dot_general(x_ref[...], w_ref[...], _CONTRACT_LAST,
                           preferred_element_type=jnp.float32)

    @pl.when(k == 0)
    def _first():                     # write directly, no zero-init + add
        acc_ref[...] = prod

    @pl.when(k > 0)
    def _accum():
        acc_ref[...] += prod

    @pl.when(k == pl.num_programs(2) - 1)
    def _finalize():
        o_ref[...] = (acc_ref[...] + b_ref[...]).astype(o_ref.dtype)


@functools.partial(jax.jit, static_argnames=("tm", "tn", "tk", "cast_to_bf16"))
def simple_mlp_forward(x, weight, bias, *, tm=None, tn=None, tk=None,
                       cast_to_bf16=False):
    """simpleMLP.forward:  y = x @ weight.T + bias

    x: [B, F], weight: [O, F] (PyTorch nn.Linear layout), bias: [O] -> [B, O].
    """
    B, F = x.shape
    O, F2 = weight.shape
    assert F == F2, (F, F2)
    assert bias.shape == (O,), bias.shape

    out_dtype = x.dtype
    b2d = bias.reshape(1, O)

    # ------------------------------------------------------------------ #
    # Fast path for small shapes (incl. the shipped 8x32x8 config): one  #
    # ungridded kernel, full-dim blocks (legal regardless of (8,128)     #
    # alignment), no padding, no output slice, no accumulator scratch.   #
    # ------------------------------------------------------------------ #
    itemsize = jnp.dtype(x.dtype).itemsize
    footprint = (B * F + O * F + B * O + O) * itemsize + B * O * 4
    if tm is None and tn is None and tk is None and footprint <= _SMALL_PATH_BYTES:
        vmem = pl.BlockSpec(memory_space=pltpu.MemorySpace.VMEM)
        return pl.pallas_call(
            _linear_whole_k_kernel,
            out_shape=jax.ShapeDtypeStruct((B, O), out_dtype),
            in_specs=[vmem, vmem, vmem],
            out_specs=vmem,
        )(x, weight, b2d)

    # ------------------------------------------------------------------ #
    # Tiled path (large shapes).                                         #
    # ------------------------------------------------------------------ #
    # Pad only to hardware (8, 128) granularity (NOT to tile multiples),
    # then choose tiles that exactly divide the padded dims.
    Bp = _round_up(B, 8)
    Op = _round_up(O, 128)
    Fp = _round_up(F, 128)
    tm = tm if tm is not None else _pick_tile(Bp, 512, 8)
    tn = tn if tn is not None else _pick_tile(Op, 512, 128)
    tk = tk if tk is not None else _pick_tile(Fp, 1024, 128)

    x_p = x if (Bp == B and Fp == F) else jnp.pad(x, ((0, Bp - B), (0, Fp - F)))
    w_p = (weight if (Op == O and Fp == F)
           else jnp.pad(weight, ((0, Op - O), (0, Fp - F))))
    b_p = b2d if Op == O else jnp.pad(b2d, ((0, 0), (0, Op - O)))

    # Optional: bf16 operands feed the 256x256 MXU on v6e/v7x at full rate and
    # halve HBM/VMEM traffic; accumulation stays f32.  Off by default to keep
    # bit-accurate f32 semantics.
    if cast_to_bf16 and x_p.dtype == jnp.float32:
        x_p = x_p.astype(jnp.bfloat16)
        w_p = w_p.astype(jnp.bfloat16)

    in_item = jnp.dtype(x_p.dtype).itemsize
    out_item = jnp.dtype(out_dtype).itemsize
    nk = Fp // tk

    # Explicit scoped-VMEM budget: double-buffered operand/output tiles plus
    # the accumulator, with ~2x headroom; clamped so it stays well inside
    # v7x's 64 MiB physical VMEM (v5e/v6e have 128 MiB).
    vmem_bytes = (2 * (tm * tk + tn * tk) * in_item   # x, w (double-buffered)
                  + 2 * tm * tn * out_item            # out (double-buffered)
                  + tm * tn * 4                       # f32 accumulator
                  + 2 * 2 * tn * 4) * 2
    vmem_bytes = int(min(max(vmem_bytes, 16 * 1024 * 1024), 48 * 1024 * 1024))

    if nk == 1:
        # Whole K fits in one block: no accumulator, bias add fused.
        out_padded = pl.pallas_call(
            _linear_whole_k_kernel,
            out_shape=jax.ShapeDtypeStruct((Bp, Op), out_dtype),
            grid_spec=pltpu.PrefetchScalarGridSpec(
                num_scalar_prefetch=0,
                grid=(Bp // tm, Op // tn),
                in_specs=[
                    pl.BlockSpec((tm, tk), lambda i, j: (i, 0)),   # x
                    pl.BlockSpec((tn, tk), lambda i, j: (j, 0)),   # w [O, F]
                    pl.BlockSpec((1, tn), lambda i, j: (0, j)),    # bias
                ],
                out_specs=pl.BlockSpec((tm, tn), lambda i, j: (i, j)),
            ),
            compiler_params=pltpu.CompilerParams(
                dimension_semantics=("parallel", "parallel"),
                vmem_limit_bytes=vmem_bytes,
            ),
        )(x_p, w_p, b_p)
    else:
        out_padded = pl.pallas_call(
            _linear_acc_kernel,
            out_shape=jax.ShapeDtypeStruct((Bp, Op), out_dtype),
            grid_spec=pltpu.PrefetchScalarGridSpec(
                num_scalar_prefetch=0,
                grid=(Bp // tm, Op // tn, nk),
                in_specs=[
                    pl.BlockSpec((tm, tk), lambda i, j, k: (i, k)),   # x
                    pl.BlockSpec((tn, tk), lambda i, j, k: (j, k)),   # w [O, F]
                    pl.BlockSpec((1, tn), lambda i, j, k: (0, j)),    # bias
                ],
                out_specs=pl.BlockSpec((tm, tn), lambda i, j, k: (i, j)),
                scratch_shapes=[pltpu.VMEM((tm, tn), jnp.float32)],
            ),
            compiler_params=pltpu.CompilerParams(
                dimension_semantics=("parallel", "parallel", "arbitrary"),
                vmem_limit_bytes=vmem_bytes,
            ),
        )(x_p, w_p, b_p)

    if Bp == B and Op == O:
        return out_padded
    return out_padded[:B, :O]


if __name__ == "__main__":
    # TODO(synk): norm / dropout / predict are constructed in __init__ but never
    # used by forward(), so only fc_input (the single Linear) is implemented.

    key = jax.random.PRNGKey(0)

    # ---- Shipped config: cfg.num_features=32, cfg.label_num=8, batch=8 ------
    B, NUM_FEATURES, LABEL_NUM = 8, 32, 8
    kx, kw, kb, k2 = jax.random.split(key, 4)
    bound = 1.0 / math.sqrt(NUM_FEATURES)
    weight = jax.random.uniform(kw, (LABEL_NUM, NUM_FEATURES),
                                minval=-bound, maxval=bound, dtype=jnp.float32)
    bias = jax.random.uniform(kb, (LABEL_NUM,), minval=-bound, maxval=bound,
                              dtype=jnp.float32)
    x = jax.random.normal(kx, (B, NUM_FEATURES), dtype=jnp.float32)

    y = jax.block_until_ready(simple_mlp_forward(x, weight, bias))
    y_ref = x @ weight.T + bias
    assert y.shape == (B, LABEL_NUM), y.shape
    assert jnp.allclose(y, y_ref, atol=1e-5, rtol=1e-5), float(
        jnp.max(jnp.abs(y - y_ref)))

    # ---- Also exercise the tiled (K-accumulating, padded) path --------------
    B2, F2, O2 = 250, 500, 250
    kx2, kw2, kb2 = jax.random.split(k2, 3)
    w2 = jax.random.normal(kw2, (O2, F2), dtype=jnp.float32) * 0.05
    b2 = jax.random.normal(kb2, (O2,), dtype=jnp.float32)
    x2 = jax.random.normal(kx2, (B2, F2), dtype=jnp.float32)
    y2 = jax.block_until_ready(
        simple_mlp_forward(x2, w2, b2, tm=128, tn=128, tk=256))
    y2_ref = x2 @ w2.T + b2
    assert y2.shape == (B2, O2), y2.shape
    assert jnp.allclose(y2, y2_ref, atol=1e-4, rtol=1e-5), float(
        jnp.max(jnp.abs(y2 - y2_ref)))

    print("KERNEL_OK")
</pallas_src>

<mosaic_0001>
module attributes {stable_mosaic.version = 11 : i64} {
  func.func @_linear_whole_k_kernel(%arg0: memref<8x32xf32, #tpu.memory_space<vmem>>, %arg1: memref<8x32xf32, #tpu.memory_space<vmem>>, %arg2: memref<1x8xf32, #tpu.memory_space<vmem>>, %arg3: memref<8x8xf32, #tpu.memory_space<vmem>>) attributes {dimension_semantics = [], scalar_prefetch = 0 : i64, scratch_operands = 0 : i64, tpu.core_type = #tpu.core_type<tc>} {
    %c0 = arith.constant 0 : index
    %c0_0 = arith.constant 0 : index
    %0 = vector.load %arg0[%c0, %c0_0] : memref<8x32xf32, #tpu.memory_space<vmem>>, vector<8x32xf32>
    %c0_1 = arith.constant 0 : index
    %c0_2 = arith.constant 0 : index
    %1 = vector.load %arg1[%c0_1, %c0_2] : memref<8x32xf32, #tpu.memory_space<vmem>>, vector<8x32xf32>
    %cst = arith.constant dense<0.000000e+00> : vector<8x8xf32>
    %2 = tpu.matmul %0, %1, %cst {dimension_numbers = #tpu.dot_dimension_numbers<[1], [1], [0], [0], [0, 0, 1, 0], [], []>} : vector<8x32xf32>, vector<8x32xf32>, vector<8x8xf32> -> vector<8x8xf32>
    %c0_3 = arith.constant 0 : index
    %c0_4 = arith.constant 0 : index
    %3 = vector.load %arg2[%c0_3, %c0_4] : memref<1x8xf32, #tpu.memory_space<vmem>>, vector<1x8xf32>
    %4 = vector.broadcast %3 : vector<1x8xf32> to vector<8x8xf32>
    %5 = arith.addf %2, %4 : vector<8x8xf32>
    %c0_5 = arith.constant 0 : index
    %c0_6 = arith.constant 0 : index
    %6 = vector.load %arg3[%c0_5, %c0_6] : memref<8x8xf32, #tpu.memory_space<vmem>>, vector<8x8xf32>
    tpu.vector_store %arg3[%c0_5, %c0_6], %5 {strides = array<i32>} : memref<8x8xf32, #tpu.memory_space<vmem>>, vector<8x8xf32>,
    return
  }
}

</mosaic_0001>

<llo_original>
// kernel: simple_mlp_forward.1
$region0: #{simple_mlp_forward.1}
  #allocation0 [shape = 'u32[]', space=smem, size = 0x4, offset = 0x4, fixed_abs, tag = 'smem constant byte address 0x4 - core index']
  #allocation1 [shape = 'u32[144,128]{1,0:T(1,128)}', space=vmem, size = 0x12000, scoped, tag = 'internal scratch']
  %s0 = inlined_call_operand.hbm [shape: f32[8,32], index: 0, kind: input, shape index: {}]
  %s1 = inlined_call_operand.hbm [shape: f32[8,32], index: 1, kind: input, shape index: {}]
  %s2 = inlined_call_operand.vmem [shape: f32[1,8], index: 2, kind: input, shape index: {}]
  %s3 = inlined_call_operand.hbm [shape: f32[8,8], index: 3, kind: output, shape index: {}]
  %s4 = sld [smem:[#allocation0]]
  $region30: #{simple_mlp_forward.1} parent=0
    _
  %s6 = ssub.s32 1, %s4
  %s7 = scalar_select 0, %s6, %s4
  $region1: #{simple_mlp_forward.1} parent=0
    #allocation2 [shape = 'u8[4096]{0}', space=vmem, size = 0x1000, scoped, tag = 'input window, operand 0, single buffered']
    #allocation3 [shape = 's32[1]{0}', space=sflag, size = 0x4, scoped, tag = 'scoped memory for simple_mlp_forward.1']
    #allocation4 [shape = 's32[1]{0}', space=sflag, size = 0x4, scoped, tag = 'scoped memory for simple_mlp_forward.1']
    #allocation5 [shape = 'u8[4096]{0}', space=vmem, size = 0x1000, scoped, tag = 'input window, operand 1, single buffered']
    #allocation6 [shape = 's32[1]{0}', space=sflag, size = 0x4, scoped, tag = 'scoped memory for simple_mlp_forward.1']
    #allocation7 [shape = 'u8[4096]{0}', space=vmem, size = 0x1000, scoped, tag = 'output window, operand 0, single buffered']
    %8 = vsyncpa [#allocation3], 0
    %9 = vsyncpa [#allocation6], 0
    %10 = vsyncpa [#allocation4], 0
    // Predicated region
    $region2: #{simple_mlp_forward.1} parent=1 // pred_check
      _
    $region3: #{simple_mlp_forward.1} parent=1 // pred_check_branch
      %12 = sbr.rel (0) target = $region5
    $region4: #{simple_mlp_forward.1} parent=1 // pred_region
      %s14 = ssub.s32 128, 128
      %15 = vsyncadd [#allocation3], %s14
      %s17 = sshll.u32 [#allocation2], 4
      %s18 = int_to_ptr.vmem [resolvable:$true] %s17
      %20 = dma.hbm_to_vmem [thread:$0]  %s0, 128, %s18, [#allocation3]
    $region5: #{simple_mlp_forward.1} parent=1 // pred_fallthru
      _
    // Predicated region
    $region6: #{simple_mlp_forward.1} parent=1 // pred_check
      _
    $region7: #{simple_mlp_forward.1} parent=1 // pred_check_branch
      %22 = sbr.rel (0) target = $region9
    $region8: #{simple_mlp_forward.1} parent=1 // pred_region
      %s24 = ssub.s32 128, 128
      %25 = vsyncadd [#allocation6], %s24
      %s27 = sshll.u32 [#allocation5], 4
      %s28 = int_to_ptr.vmem [resolvable:$true] %s27
      %30 = dma.hbm_to_vmem [thread:$0]  %s1, 128, %s28, [#allocation6]
    $region9: #{simple_mlp_forward.1} parent=1 // pred_fallthru
      _
    // Predicated region
    $region10: #{simple_mlp_forward.1} parent=1 // pred_check
      _
    $region11: #{simple_mlp_forward.1} parent=1 // pred_check_branch
      %32 = sbr.rel (0) target = $region13
    $region12: #{simple_mlp_forward.1} parent=1 // pred_region
      _
    $region13: #{simple_mlp_forward.1} parent=1 // pred_fallthru
      _
    // Predicated region
    $region14: #{simple_mlp_forward.1} parent=1 // pred_check
      _
    $region15: #{simple_mlp_forward.1} parent=1 // pred_check_branch
      %34 = sbr.rel (0) target = $region17
    $region16: #{simple_mlp_forward.1} parent=1 // pred_region
      %35 = dma.done [#allocation3], 128
    $region17: #{simple_mlp_forward.1} parent=1 // pred_fallthru
      _
    // Predicated region
    $region18: #{simple_mlp_forward.1} parent=1 // pred_check
      _
    $region19: #{simple_mlp_forward.1} parent=1 // pred_check_branch
      %37 = sbr.rel (0) target = $region21
    $region20: #{simple_mlp_forward.1} parent=1 // pred_region
      %38 = dma.done [#allocation6], 128
    $region21: #{simple_mlp_forward.1} parent=1 // pred_fallthru
      _
    %v39 = vld [vmem:[#allocation2] sm:$0xff]
    %v40 = vld [vmem:[#allocation5] sm:$0xff]
    %v41 = vld [vmem:[%s2] sm:$0x1]
    %v43 = vlaneseq
    %v44 = vshrl.u32 %v43, 7
    %v45 = vsub.s32 0, %v44
    %v46 = vrot.slane %v41, %v45
    %vm48 = vcmask 261120
    %v50 = vsel %vm48, %v39, 0
    %v53 = vsel %vm48, %v40, 0
    %55 = vmatprep.subr.mxu0 0.0
    %56 = vmatpush1.xpose.msra.mxu0 %v53
    %57 = vmatprep.subr.mxu0 0.0
    %58 = vmatpush1.xpose.msra.mxu0 0.0
    %59 = vmatprep.subr.mxu0 0.0
    %60 = vmatpush1.xpose.msra.mxu0 0.0
    %61 = vmatprep.subr.mxu0 0.0
    %62 = vmatpush1.xpose.msra.mxu0 0.0
    %63 = vmatprep.subr.mxu0 0.0
    %64 = vmatpush1.xpose.msra.mxu0 0.0
    %65 = vmatprep.subr.mxu0 0.0
    %66 = vmatpush1.xpose.msra.mxu0 0.0
    %67 = vmatprep.subr.mxu0 0.0
    %68 = vmatpush1.xpose.msra.mxu0 0.0
    %69 = vmatprep.subr.mxu0 0.0
    %70 = vmatpush1.xpose.msra.mxu0 0.0
    %71 = vmatprep.subr.mxu0 0.0
    %72 = vmatpush1.xpose.msra.mxu0 0.0
    %73 = vmatprep.subr.mxu0 0.0
    %74 = vmatpush1.xpose.msra.mxu0 0.0
    %75 = vmatprep.subr.mxu0 0.0
    %76 = vmatpush1.xpose.msra.mxu0 0.0
    %77 = vmatprep.subr.mxu0 0.0
    %78 = vmatpush1.xpose.msra.mxu0 0.0
    %79 = vmatprep.subr.mxu0 0.0
    %80 = vmatpush1.xpose.msra.mxu0 0.0
    %81 = vmatprep.subr.mxu0 0.0
    %82 = vmatpush1.xpose.msra.mxu0 0.0
    %83 = vmatprep.subr.mxu0 0.0
    %84 = vmatpush1.xpose.msra.mxu0 0.0
    %85 = vmatprep.subr.mxu0 0.0
    %86 = vmatpush1.xpose.msra.mxu0 0.0
    %87 = vmatprep.subr.mxu0 0.0
    %88 = vmatpush1.xpose.msra.mxu0 0.0
    %89 = vmatprep.subr.mxu0 0.0
    %90 = vmatpush1.xpose.msra.mxu0 0.0
    %91 = vmatprep.subr.mxu0 0.0
    %92 = vmatpush1.xpose.msra.mxu0 0.0
    %93 = vmatprep.subr.mxu0 0.0
    %94 = vmatpush1.xpose.msra.mxu0 0.0
    %95 = vmatprep.subr.mxu0 0.0
    %96 = vmatpush1.xpose.msra.mxu0 0.0
    %97 = vmatprep.subr.mxu0 0.0
    %98 = vmatpush1.xpose.msra.mxu0 0.0
    %99 = vmatprep.subr.mxu0 0.0
    %100 = vmatpush1.xpose.msra.mxu0 0.0
    %101 = vmatprep.subr.mxu0 0.0
    %102 = vmatpush1.xpose.msra.mxu0 0.0
    %103 = vmatprep.subr.mxu0 0.0
    %104 = vmatpush1.xpose.msra.mxu0 0.0
    %105 = vmatprep.subr.mxu0 0.0
    %106 = vmatpush1.xpose.msra.mxu0 0.0
    %107 = vmatprep.subr.mxu0 0.0
    %108 = vmatpush1.xpose.msra.mxu0 0.0
    %109 = vmatprep.subr.mxu0 0.0
    %110 = vmatpush1.xpose.msra.mxu0 0.0
    %111 = vmatprep.subr.mxu0 0.0
    %112 = vmatpush1.xpose.msra.mxu0 0.0
    %113 = vmatprep.subr.mxu0 0.0
    %114 = vmatpush1.xpose.msra.mxu0 0.0
    %115 = vmatprep.subr.mxu0 0.0
    %116 = vmatpush1.xpose.msra.mxu0 0.0
    %117 = vmatprep.subr.mxu0 0.0
    %118 = vmatpush1.xpose.msra.mxu0 0.0
    %119 = vmatprep.mubr.f32.mxu0 0.0
    %120 = vmatmul.mubr.f32.gmra.mrb[0].mxu0 %v50
    %v121 = vpop.f32.mrb[0].mxu0
    %v122 = vadd.f32 %v46, %v121
    %v123 = vpop.f32.mrb[0].mxu0
    %124 = vdwg.mxu0
    %vm125 = vcmask 64512
    %126 = vst.msk [vmem:[#allocation7] sm:$0xff] %vm125, %v122
    // Predicated region
    $region22: #{simple_mlp_forward.1} parent=1 // pred_check
      _
    $region23: #{simple_mlp_forward.1} parent=1 // pred_check_branch
      %128 = sbr.rel (0) target = $region25
    $region24: #{simple_mlp_forward.1} parent=1 // pred_region
      %s130 = ssub.s32 128, 128
      %131 = vsyncadd [#allocation4], %s130
      %s133 = sshll.u32 [#allocation7], 4
      %s134 = int_to_ptr.vmem [resolvable:$true] %s133
      %136 = dma.vmem_to_hbm [thread:$0]  %s134, 128, %s3, [#allocation4]
    $region25: #{simple_mlp_forward.1} parent=1 // pred_fallthru
      _
    // Predicated region
    $region26: #{simple_mlp_forward.1} parent=1 // pred_check
      _
    $region27: #{simple_mlp_forward.1} parent=1 // pred_check_branch
      %138 = sbr.rel (0) target = $region29
    $region28: #{simple_mlp_forward.1} parent=1 // pred_region
      %139 = dma.done [#allocation4], 128
    $region29: #{simple_mlp_forward.1} parent=1 // pred_fallthru
      _
    %140 = vsyncpa [#allocation3], 1
    %141 = vsyncpa [#allocation6], 1
    %142 = vsyncpa [#allocation4], 1

</llo_original>
